<compile_context>
chip_gen: v6e
topology: v6e:2x2x1
jax: 0.10.0
libtpu: 0.0.40
codegen_flags: <defaults>
</compile_context>

<pallas_src>
import math
from functools import partial

import numpy as np
import jax
import jax.numpy as jnp
from jax import lax
from jax.experimental import pallas as pl
from jax.experimental.pallas import tpu as pltpu

DEPTH_NORMALIZATION_FACTOR = 10.0   # to_depth_meters
DEPTH_MIN = 0.01                    # remove_invalid_depth_values
DEPTH_MAX = 0.99
DELTA_HEIGHT_MIN = 1.0              # remove_invalid_height_values
DELTA_HEIGHT_MAX = 0.5


def _camera_params(pose, elevation, heading):
    """SMNet-style _transform3D(pose, elevation + pi, heading) flattened to
    (B, 16): [r00 r01 r02 t0  r10 r11 r12 t1  r20 r21 r22 t2  robot_h 0 0 0]."""
    theta_x = elevation + jnp.pi
    sx, cx = jnp.sin(theta_x), jnp.cos(theta_x)
    theta_y = heading
    sy, cy = jnp.sin(theta_y), jnp.cos(theta_y)
    zeros = jnp.zeros_like(sx)
    T = jnp.stack(
        [
            cy, sx * sy, cx * sy, pose[:, 0],
            zeros, cx, -sx, pose[:, 1],
            -sy, cy * sx, cy * cx, pose[:, 2],
        ],
        axis=-1,
    )
    robot_height = pose[:, 1][:, None]
    pad = jnp.zeros((pose.shape[0], 3), pose.dtype)
    return jnp.concatenate([T, robot_height, pad], axis=-1).astype(jnp.float32)


def _tpu_memory_profile():
    """(double-buffered working-set budget, vmem_limit ceiling, min parallel
    grid steps) per TPU generation.  v7x: 64 MiB physical VMEM and 2
    TensorCores per chip -> tighter budget and >= 2 parallel steps so both
    cores get work.  v5e / v6e (and default): 128 MiB physical VMEM, 1 TC."""
    kind = ""
    try:
        kind = jax.devices()[0].device_kind.lower()
    except Exception:
        pass
    if "v7" in kind:
        return (22 << 20), (56 << 20), 2
    return (48 << 20), (100 << 20), 1


def _choose_tile_h(B, H, W, bytes_per_pixel, vmem_budget, min_steps):
    """Row-tile height.  Prefer TH = H (one contiguous output span per batch)
    whenever the double-buffered working set fits the per-generation VMEM
    budget and the grid still has >= min_steps steps (v7x megacore);
    otherwise the largest divisor of H that is a multiple of 32 (int8 mask
    sublane packing) and fits.  Avoids collapsing to 32-row tiles where the
    fixed ~0.35 us per-grid-step overhead rivals the DMA time."""
    def ws(th):  # double-buffered per-step working set in bytes
        return 2 * th * W * bytes_per_pixel

    cands = [H] + [d for d in range(H - 1, 0, -1) if H % d == 0 and d % 32 == 0]
    for th in cands:                       # largest-first: budget + megacore
        if ws(th) <= vmem_budget and B * (H // th) >= min_steps:
            return th
    for th in cands:                       # relax the megacore preference
        if ws(th) <= vmem_budget:
            return th
    return cands[-1]                       # smallest legal fallback


@partial(jax.jit, static_argnums=(4, 5))
def _pointcloud_device(depth_normalized, pose, elevation, heading, vfov,
                       xyz_dtype):
    """Pallas kernel wrapper.

    Returns:
      xyz  : (B, 3, H, W) xyz_dtype world-frame points (channel-planar)
      mask : (B, 1, H, W) int8 validity mask (depth + height filters)
    """
    B, _, H, W = depth_normalized.shape

    depth_bytes = jnp.dtype(depth_normalized.dtype).itemsize
    xyz_bytes = jnp.dtype(xyz_dtype).itemsize
    bytes_per_pixel = depth_bytes + 3 * xyz_bytes + 1   # depth in + xyz out + mask
    vmem_budget, vmem_ceiling, min_steps = _tpu_memory_profile()
    TH = _choose_tile_h(B, H, W, bytes_per_pixel, vmem_budget, min_steps)
    working_set = 2 * TH * W * bytes_per_pixel
    # Explicit VMEM limit: v5e's 16 MiB scoped default (and v6e/v7x's 32 MiB)
    # would otherwise cap the large tiles this memory-bound kernel wants.
    vmem_limit = int(min(vmem_ceiling, max(32 << 20, working_set + (8 << 20))))

    # Static intrinsics (vfov, H, W are trace-time constants) baked into the
    # kernel as Python floats; no (H, W) scale planes are streamed from HBM.
    f_x = (W / 2.0) / math.tan(vfov / 2.0)
    f_y = (H / 2.0) / math.tan(vfov / 2.0)
    c_x, c_y = W / 2.0, H / 2.0
    inv_fx, inv_fy = 1.0 / f_x, 1.0 / f_y

    params = _camera_params(pose, elevation, heading)           # (B, 16) f32

    def kernel(params_ref, depth_ref, xyz_ref, mask_ref):
        b = pl.program_id(0)
        h = pl.program_id(1)

        # depth cast + scale are free VPU work under the HBM roofline; a
        # narrow (bf16/u16) depth input would be accepted here unchanged.
        depth_n = depth_ref[0, 0].astype(jnp.float32)           # (TH, W)
        depth_m = depth_n * DEPTH_NORMALIZATION_FACTOR          # to_depth_meters

        # Hoisted pinhole intrinsics: a (1, W) row vector and a (TH, 1)
        # column vector instead of two full (TH, W) planes.
        row0 = (h * TH).astype(jnp.float32)
        u = lax.broadcasted_iota(jnp.int32, (1, W), 1).astype(jnp.float32)
        v = lax.broadcasted_iota(jnp.int32, (TH, 1), 0).astype(jnp.float32)
        xs = (u + (0.5 - c_x)) * inv_fx                          # (1, W)
        ys = (v + (row0 + 0.5 - c_y)) * inv_fy                   # (TH, 1)

        # camera-to-world 3x4 transform entries (scalar reads from SMEM)
        r00 = params_ref[b, 0]
        r01 = params_ref[b, 1]
        r02 = params_ref[b, 2]
        t0 = params_ref[b, 3]
        r10 = params_ref[b, 4]
        r11 = params_ref[b, 5]
        r12 = params_ref[b, 6]
        t1 = params_ref[b, 7]
        r20 = params_ref[b, 8]
        r21 = params_ref[b, 9]
        r22 = params_ref[b, 10]
        t2 = params_ref[b, 11]
        robot_height = params_ref[b, 12]

        # Rotation folded into the hoisted intrinsics:
        #   w_c = depth_m * (r_c0*xs + r_c1*ys + r_c2) + t_c
        # == R @ [xs*d, ys*d, d] + t with ~half the per-pixel VALU work.
        x_w = depth_m * ((r00 * xs + r02) + r01 * ys) + t0
        y_w = depth_m * ((r10 * xs + r12) + r11 * ys) + t1
        z_w = depth_m * ((r20 * xs + r22) + r21 * ys) + t2

        # per-channel full-row contiguous stores (lane-dense planar layout)
        xyz_ref[0, 0] = x_w.astype(xyz_ref.dtype)
        xyz_ref[0, 1] = y_w.astype(xyz_ref.dtype)
        xyz_ref[0, 2] = z_w.astype(xyz_ref.dtype)

        # validity: normalized depth in (DEPTH_MIN, DEPTH_MAX) AND height (y_w)
        # in (robot_height - DELTA_HEIGHT_MIN, robot_height + DELTA_HEIGHT_MAX)
        valid = jnp.logical_and(depth_n > DEPTH_MIN, depth_n < DEPTH_MAX)
        valid = jnp.logical_and(
            valid,
            jnp.logical_and(y_w > robot_height - DELTA_HEIGHT_MIN,
                            y_w < robot_height + DELTA_HEIGHT_MAX))
        mask_ref[0, 0] = valid.astype(jnp.int8)

    xyz, mask = pl.pallas_call(
        kernel,
        out_shape=(
            jax.ShapeDtypeStruct((B, 3, H, W), xyz_dtype),
            jax.ShapeDtypeStruct((B, 1, H, W), jnp.int8),
        ),
        grid=(B, H // TH),
        in_specs=[
            # whole (B, 16) params table resident in SMEM (constant block
            # index -> no per-step SMEM block swap)
            pl.BlockSpec((B, 16), lambda b, h: (0, 0),
                         memory_space=pltpu.MemorySpace.SMEM),
            pl.BlockSpec((1, 1, TH, W), lambda b, h: (b, 0, h, 0)),
        ],
        out_specs=(
            pl.BlockSpec((1, 3, TH, W), lambda b, h: (b, 0, h, 0)),
            pl.BlockSpec((1, 1, TH, W), lambda b, h: (b, 0, h, 0)),
        ),
        compiler_params=pltpu.CompilerParams(
            dimension_semantics=("parallel", "parallel"),
            vmem_limit_bytes=vmem_limit),
    )(params, depth_normalized)
    return xyz, mask


def generate_semantic_pointcloud(depth_normalized, semantics, pose, elevation,
                                 heading, vfov, xyz_dtype=jnp.float32):
    """Forward pass of GenerateSemanticPointCloud.

    Device (Pallas) part produces the dense planar point cloud + int8 validity
    mask.  The deterministic batch-index ramp and the data-dependent boolean
    compaction (PyTorch's masked indexing yields dynamic output lengths, which
    a statically shaped TPU kernel cannot express) are done host-side.
    Returns a dict mimicking SemanticPointcloud: batch_indices (N,),
    xyz (N, 3), semantics (N,).
    """
    xyz, mask = _pointcloud_device(depth_normalized, pose, elevation, heading,
                                   float(vfov), xyz_dtype)
    xyz_np = np.asarray(xyz)                                  # (B, 3, H, W)
    mask_np = np.asarray(mask).astype(bool).reshape(-1)       # (B*H*W,)
    B, _, H, W = xyz_np.shape
    # batch indices built host-side: avoids an extra B*H*W*4 bytes of device
    # HBM write + readback for a deterministic ramp (former jnp.repeat).
    batch_flat = np.repeat(np.arange(B, dtype=np.int64), H * W)
    sem_flat = np.asarray(semantics).reshape(-1)              # C == 1 -> reshape
    # planar -> (N, 3) row assembly on the already-compacted data
    xyz_rows = np.stack([xyz_np[:, c].reshape(-1)[mask_np] for c in range(3)],
                        axis=-1)
    # TODO(synk): boolean-mask compaction stays on host (data-dependent shape).
    return {
        "batch_indices": batch_flat[mask_np],
        "xyz": xyz_rows,
        "semantics": sem_flat[mask_np],
    }


def _reference_jax(depth_normalized, pose, elevation, heading, vfov):
    """Pure-JAX reference of the kernel math for verification (planar layout)."""
    B, _, H, W = depth_normalized.shape
    f_x = (W / 2.0) / math.tan(vfov / 2.0)
    f_y = (H / 2.0) / math.tan(vfov / 2.0)
    c_x, c_y = W / 2.0, H / 2.0
    u = jnp.arange(W, dtype=jnp.float32)[None, :] + 0.5
    v = jnp.arange(H, dtype=jnp.float32)[:, None] + 0.5
    x_scale = (u - c_x) / f_x
    y_scale = (v - c_y) / f_y

    depth_n = depth_normalized[:, 0].astype(jnp.float32)         # (B, H, W)
    depth_m = depth_n * DEPTH_NORMALIZATION_FACTOR
    cam = jnp.stack([jnp.broadcast_to(x_scale, (H, W))[None] * depth_m,
                     jnp.broadcast_to(y_scale, (H, W))[None] * depth_m,
                     depth_m], axis=1)                           # (B, 3, H, W)
    T = _camera_params(pose, elevation, heading)[:, :12].reshape(B, 3, 4)
    R, t = T[:, :, :3], T[:, :, 3]
    world = jnp.einsum("bij,bjhw->bihw", R, cam) + t[:, :, None, None]
    rh = pose[:, 1].astype(jnp.float32)[:, None, None]
    valid = (depth_n > DEPTH_MIN) & (depth_n < DEPTH_MAX)
    y_w = world[:, 1]
    valid &= (y_w > rh - DELTA_HEIGHT_MIN) & (y_w < rh + DELTA_HEIGHT_MAX)
    return world, valid[:, None]


if __name__ == "__main__":
    key = jax.random.PRNGKey(0)
    k_depth, k_sem, k_pose, k_elev, k_head = jax.random.split(key, 5)

    # Small but tiling-exercising shape: H=64, W=128 lanes.
    B, H, W = 2, 64, 128
    vfov = math.radians(60.0)  # CameraParameters.vertical_fov_radians

    depth_normalized = jax.random.uniform(k_depth, (B, 1, H, W),
                                          dtype=jnp.float32)
    semantics = jax.random.randint(k_sem, (B, 1, H, W), 0, 40,
                                   dtype=jnp.int32)
    pose = jax.random.normal(k_pose, (B, 3), dtype=jnp.float32)
    elevation = 0.1 * jax.random.normal(k_elev, (B,), dtype=jnp.float32)
    heading = jax.random.uniform(k_head, (B,), dtype=jnp.float32,
                                 minval=-math.pi, maxval=math.pi)

    # dense planar point cloud + validity mask from the Pallas kernel
    xyz, mask = _pointcloud_device(depth_normalized, pose, elevation, heading,
                                   vfov, jnp.float32)
    jax.block_until_ready((xyz, mask))

    # verify kernel math against a pure-JAX reference (planar, no transposes)
    xyz_ref, mask_ref = _reference_jax(depth_normalized, pose, elevation,
                                       heading, vfov)
    np.testing.assert_allclose(np.asarray(xyz), np.asarray(xyz_ref),
                               rtol=1e-5, atol=1e-4)
    np.testing.assert_array_equal(np.asarray(mask).astype(bool),
                                  np.asarray(mask_ref))

    # full forward (device kernel + host-side compaction, as in the module)
    semantic_pointcloud = generate_semantic_pointcloud(
        depth_normalized, semantics, pose, elevation, heading, vfov)
    n_valid = int(np.asarray(mask).astype(bool).sum())
    assert semantic_pointcloud["xyz"].shape == (n_valid, 3)
    assert semantic_pointcloud["semantics"].shape == (n_valid,)
    assert semantic_pointcloud["batch_indices"].shape == (n_valid,)

    print("KERNEL_OK")
</pallas_src>

<mosaic_0001>
module attributes {stable_mosaic.version = 11 : i64} {
  func.func @kernel(%arg0: i32, %arg1: i32, %arg2: memref<2x16xf32, #tpu.memory_space<smem>>, %arg3: memref<1x1x64x128xf32, #tpu.memory_space<vmem>>, %arg4: memref<1x3x64x128xf32, #tpu.memory_space<vmem>>, %arg5: memref<1x1x64x128xi8, #tpu.memory_space<vmem>>) attributes {dimension_semantics = [#tpu.dimension_semantics<parallel>, #tpu.dimension_semantics<parallel>], iteration_bounds = array<i64: 2, 1>, scalar_prefetch = 0 : i64, scratch_operands = 0 : i64, tpu.core_type = #tpu.core_type<tc>, window_params = [{transform_indices = @transform_0, window_bounds = array<i64: 2, 16>}, {transform_indices = @transform_1, window_bounds = array<i64: 1, 1, 64, 128>}, {transform_indices = @transform_2, window_bounds = array<i64: 1, 3, 64, 128>}, {transform_indices = @transform_3, window_bounds = array<i64: 1, 1, 64, 128>}]} {
    %c0 = arith.constant 0 : index
    %c0_0 = arith.constant 0 : index
    %c0_1 = arith.constant 0 : index
    %c0_2 = arith.constant 0 : index
    %0 = vector.load %arg3[%c0, %c0_0, %c0_1, %c0_2] : memref<1x1x64x128xf32, #tpu.memory_space<vmem>>, vector<1x1x64x128xf32>
    %1 = vector.shape_cast %0 : vector<1x1x64x128xf32> to vector<64x128xf32>
    %cst = arith.constant 1.000000e+01 : f32
    %2 = vector.broadcast %cst : f32 to vector<64x128xf32>
    %3 = arith.mulf %1, %2 : vector<64x128xf32>
    %c64_i32 = arith.constant 64 : i32
    %4 = arith.muli %arg1, %c64_i32 : i32
    %5 = arith.sitofp %4 : i32 to f32
    %6 = tpu.iota {dimensions = array<i32: 1>} : vector<1x128xi32>
    %7 = arith.sitofp %6 : vector<1x128xi32> to vector<1x128xf32>
    %8 = tpu.iota {dimensions = array<i32: 0>} : vector<64x1xi32>
    %9 = arith.sitofp %8 : vector<64x1xi32> to vector<64x1xf32>
    %cst_3 = arith.constant -6.350000e+01 : f32
    %10 = vector.broadcast %cst_3 : f32 to vector<1x128xf32>
    %11 = arith.addf %7, %10 : vector<1x128xf32>
    %cst_4 = arith.constant 0.00902109779 : f32
    %12 = vector.broadcast %cst_4 : f32 to vector<1x128xf32>
    %13 = arith.mulf %11, %12 : vector<1x128xf32>
    %cst_5 = arith.constant 5.000000e-01 : f32
    %14 = arith.addf %5, %cst_5 : f32
    %cst_6 = arith.constant 3.200000e+01 : f32
    %15 = arith.subf %14, %cst_6 : f32
    %16 = vector.broadcast %15 : f32 to vector<64x1xf32>
    %17 = arith.addf %9, %16 : vector<64x1xf32>
    %cst_7 = arith.constant 0.0180421956 : f32
    %18 = vector.broadcast %cst_7 : f32 to vector<64x1xf32>
    %19 = arith.mulf %17, %18 : vector<64x1xf32>
    %20 = arith.index_cast %arg0 : i32 to index
    %c0_8 = arith.constant 0 : index
    %21 = memref.load %arg2[%20, %c0_8] : memref<2x16xf32, #tpu.memory_space<smem>>
    %22 = arith.index_cast %arg0 : i32 to index
    %c1 = arith.constant 1 : index
    %23 = memref.load %arg2[%22, %c1] : memref<2x16xf32, #tpu.memory_space<smem>>
    %24 = arith.index_cast %arg0 : i32 to index
    %c2 = arith.constant 2 : index
    %25 = memref.load %arg2[%24, %c2] : memref<2x16xf32, #tpu.memory_space<smem>>
    %26 = arith.index_cast %arg0 : i32 to index
    %c3 = arith.constant 3 : index
    %27 = memref.load %arg2[%26, %c3] : memref<2x16xf32, #tpu.memory_space<smem>>
    %28 = arith.index_cast %arg0 : i32 to index
    %c4 = arith.constant 4 : index
    %29 = memref.load %arg2[%28, %c4] : memref<2x16xf32, #tpu.memory_space<smem>>
    %30 = arith.index_cast %arg0 : i32 to index
    %c5 = arith.constant 5 : index
    %31 = memref.load %arg2[%30, %c5] : memref<2x16xf32, #tpu.memory_space<smem>>
    %32 = arith.index_cast %arg0 : i32 to index
    %c6 = arith.constant 6 : index
    %33 = memref.load %arg2[%32, %c6] : memref<2x16xf32, #tpu.memory_space<smem>>
    %34 = arith.index_cast %arg0 : i32 to index
    %c7 = arith.constant 7 : index
    %35 = memref.load %arg2[%34, %c7] : memref<2x16xf32, #tpu.memory_space<smem>>
    %36 = arith.index_cast %arg0 : i32 to index
    %c8 = arith.constant 8 : index
    %37 = memref.load %arg2[%36, %c8] : memref<2x16xf32, #tpu.memory_space<smem>>
    %38 = arith.index_cast %arg0 : i32 to index
    %c9 = arith.constant 9 : index
    %39 = memref.load %arg2[%38, %c9] : memref<2x16xf32, #tpu.memory_space<smem>>
    %40 = arith.index_cast %arg0 : i32 to index
    %c10 = arith.constant 10 : index
    %41 = memref.load %arg2[%40, %c10] : memref<2x16xf32, #tpu.memory_space<smem>>
    %42 = arith.index_cast %arg0 : i32 to index
    %c11 = arith.constant 11 : index
    %43 = memref.load %arg2[%42, %c11] : memref<2x16xf32, #tpu.memory_space<smem>>
    %44 = arith.index_cast %arg0 : i32 to index
    %c12 = arith.constant 12 : index
    %45 = memref.load %arg2[%44, %c12] : memref<2x16xf32, #tpu.memory_space<smem>>
    %46 = vector.broadcast %21 : f32 to vector<1x128xf32>
    %47 = arith.mulf %46, %13 : vector<1x128xf32>
    %48 = vector.broadcast %25 : f32 to vector<1x128xf32>
    %49 = arith.addf %47, %48 : vector<1x128xf32>
    %50 = vector.broadcast %23 : f32 to vector<64x1xf32>
    %51 = arith.mulf %50, %19 : vector<64x1xf32>
    %52 = vector.broadcast %49 : vector<1x128xf32> to vector<64x128xf32>
    %53 = vector.broadcast %51 : vector<64x1xf32> to vector<64x128xf32>
    %54 = arith.addf %52, %53 : vector<64x128xf32>
    %55 = arith.mulf %3, %54 : vector<64x128xf32>
    %56 = vector.broadcast %27 : f32 to vector<64x128xf32>
    %57 = arith.addf %55, %56 : vector<64x128xf32>
    %58 = vector.broadcast %29 : f32 to vector<1x128xf32>
    %59 = arith.mulf %58, %13 : vector<1x128xf32>
    %60 = vector.broadcast %33 : f32 to vector<1x128xf32>
    %61 = arith.addf %59, %60 : vector<1x128xf32>
    %62 = vector.broadcast %31 : f32 to vector<64x1xf32>
    %63 = arith.mulf %62, %19 : vector<64x1xf32>
    %64 = vector.broadcast %61 : vector<1x128xf32> to vector<64x128xf32>
    %65 = vector.broadcast %63 : vector<64x1xf32> to vector<64x128xf32>
    %66 = arith.addf %64, %65 : vector<64x128xf32>
    %67 = arith.mulf %3, %66 : vector<64x128xf32>
    %68 = vector.broadcast %35 : f32 to vector<64x128xf32>
    %69 = arith.addf %67, %68 : vector<64x128xf32>
    %70 = vector.broadcast %37 : f32 to vector<1x128xf32>
    %71 = arith.mulf %70, %13 : vector<1x128xf32>
    %72 = vector.broadcast %41 : f32 to vector<1x128xf32>
    %73 = arith.addf %71, %72 : vector<1x128xf32>
    %74 = vector.broadcast %39 : f32 to vector<64x1xf32>
    %75 = arith.mulf %74, %19 : vector<64x1xf32>
    %76 = vector.broadcast %73 : vector<1x128xf32> to vector<64x128xf32>
    %77 = vector.broadcast %75 : vector<64x1xf32> to vector<64x128xf32>
    %78 = arith.addf %76, %77 : vector<64x128xf32>
    %79 = arith.mulf %3, %78 : vector<64x128xf32>
    %80 = vector.broadcast %43 : f32 to vector<64x128xf32>
    %81 = arith.addf %79, %80 : vector<64x128xf32>
    %c0_9 = arith.constant 0 : index
    %c0_10 = arith.constant 0 : index
    %c0_11 = arith.constant 0 : index
    %c0_12 = arith.constant 0 : index
    %82 = vector.load %arg4[%c0_9, %c0_10, %c0_11, %c0_12] : memref<1x3x64x128xf32, #tpu.memory_space<vmem>>, vector<1x1x64x128xf32>
    %83 = vector.shape_cast %82 : vector<1x1x64x128xf32> to vector<64x128xf32>
    %84 = vector.shape_cast %57 : vector<64x128xf32> to vector<1x1x64x128xf32>
    tpu.vector_store %arg4[%c0_9, %c0_10, %c0_11, %c0_12], %84 {strides = array<i32>} : memref<1x3x64x128xf32, #tpu.memory_space<vmem>>, vector<1x1x64x128xf32>,
    %c0_13 = arith.constant 0 : index
    %c1_14 = arith.constant 1 : index
    %c0_15 = arith.constant 0 : index
    %c0_16 = arith.constant 0 : index
    %85 = vector.load %arg4[%c0_13, %c1_14, %c0_15, %c0_16] : memref<1x3x64x128xf32, #tpu.memory_space<vmem>>, vector<1x1x64x128xf32>
    %86 = vector.shape_cast %85 : vector<1x1x64x128xf32> to vector<64x128xf32>
    %87 = vector.shape_cast %69 : vector<64x128xf32> to vector<1x1x64x128xf32>
    tpu.vector_store %arg4[%c0_13, %c1_14, %c0_15, %c0_16], %87 {strides = array<i32>} : memref<1x3x64x128xf32, #tpu.memory_space<vmem>>, vector<1x1x64x128xf32>,
    %c0_17 = arith.constant 0 : index
    %c2_18 = arith.constant 2 : index
    %c0_19 = arith.constant 0 : index
    %c0_20 = arith.constant 0 : index
    %88 = vector.load %arg4[%c0_17, %c2_18, %c0_19, %c0_20] : memref<1x3x64x128xf32, #tpu.memory_space<vmem>>, vector<1x1x64x128xf32>
    %89 = vector.shape_cast %88 : vector<1x1x64x128xf32> to vector<64x128xf32>
    %90 = vector.shape_cast %81 : vector<64x128xf32> to vector<1x1x64x128xf32>
    tpu.vector_store %arg4[%c0_17, %c2_18, %c0_19, %c0_20], %90 {strides = array<i32>} : memref<1x3x64x128xf32, #tpu.memory_space<vmem>>, vector<1x1x64x128xf32>,
    %cst_21 = arith.constant 0.00999999977 : f32
    %91 = vector.broadcast %cst_21 : f32 to vector<64x128xf32>
    %92 = arith.cmpf ogt, %1, %91 : vector<64x128xf32>
    %cst_22 = arith.constant 9.900000e-01 : f32
    %93 = vector.broadcast %cst_22 : f32 to vector<64x128xf32>
    %94 = arith.cmpf olt, %1, %93 : vector<64x128xf32>
    %95 = arith.andi %92, %94 : vector<64x128xi1>
    %cst_23 = arith.constant 1.000000e+00 : f32
    %96 = arith.subf %45, %cst_23 : f32
    %97 = vector.broadcast %96 : f32 to vector<64x128xf32>
    %98 = arith.cmpf ogt, %69, %97 : vector<64x128xf32>
    %cst_24 = arith.constant 5.000000e-01 : f32
    %99 = arith.addf %45, %cst_24 : f32
    %100 = vector.broadcast %99 : f32 to vector<64x128xf32>
    %101 = arith.cmpf olt, %69, %100 : vector<64x128xf32>
    %102 = arith.andi %98, %101 : vector<64x128xi1>
    %103 = arith.andi %95, %102 : vector<64x128xi1>
    %104 = arith.extui %103 : vector<64x128xi1> to vector<64x128xi8>
    %c0_25 = arith.constant 0 : index
    %c0_26 = arith.constant 0 : index
    %c0_27 = arith.constant 0 : index
    %c0_28 = arith.constant 0 : index
    %105 = vector.load %arg5[%c0_25, %c0_26, %c0_27, %c0_28] : memref<1x1x64x128xi8, #tpu.memory_space<vmem>>, vector<1x1x64x128xi8>
    %106 = vector.shape_cast %105 : vector<1x1x64x128xi8> to vector<64x128xi8>
    %107 = vector.shape_cast %104 : vector<64x128xi8> to vector<1x1x64x128xi8>
    tpu.vector_store %arg5[%c0_25, %c0_26, %c0_27, %c0_28], %107 {strides = array<i32>} : memref<1x1x64x128xi8, #tpu.memory_space<vmem>>, vector<1x1x64x128xi8>,
    return
  }
  func.func @transform_0(%arg0: i32, %arg1: i32) -> (i32, i32) {
    %c0_i32 = arith.constant 0 : i32
    %c0_i32_0 = arith.constant 0 : i32
    %c0_i32_1 = arith.constant 0 : i32
    return %c0_i32, %c0_i32_0 : i32, i32
  }
  func.func @transform_1(%arg0: i32, %arg1: i32) -> (i32, i32, i32, i32) {
    %c0_i32 = arith.constant 0 : i32
    %c0_i32_0 = arith.constant 0 : i32
    %c0_i32_1 = arith.constant 0 : i32
    return %arg0, %c0_i32, %arg1, %c0_i32_0 : i32, i32, i32, i32
  }
  func.func @transform_2(%arg0: i32, %arg1: i32) -> (i32, i32, i32, i32) {
    %c0_i32 = arith.constant 0 : i32
    %c0_i32_0 = arith.constant 0 : i32
    %c0_i32_1 = arith.constant 0 : i32
    return %arg0, %c0_i32, %arg1, %c0_i32_0 : i32, i32, i32, i32
  }
  func.func @transform_3(%arg0: i32, %arg1: i32) -> (i32, i32, i32, i32) {
    %c0_i32 = arith.constant 0 : i32
    %c0_i32_0 = arith.constant 0 : i32
    %c0_i32_1 = arith.constant 0 : i32
    return %arg0, %c0_i32, %arg1, %c0_i32_0 : i32, i32, i32, i32
  }
}

</mosaic_0001>

<llo_original>
// kernel: _pointcloud_device.1
$region0: #{_pointcloud_device.1}
  #allocation0 [shape = 'u32[]', space=smem, size = 0x4, offset = 0x4, fixed_abs, tag = 'smem constant byte address 0x4 - core index']
  #allocation1 [shape = 'u32[144,128]{1,0:T(1,128)}', space=vmem, size = 0x12000, scoped, tag = 'internal scratch']
  %s0 = inlined_call_operand.vmem [shape: f32[2,16], index: 0, kind: input, shape index: {}]
  %s1 = inlined_call_operand.hbm [shape: f32[2,1,64,128], index: 1, kind: input, shape index: {}]
  %s2 = inlined_call_operand.hbm [shape: f32[2,3,64,128], index: 2, kind: output, shape index: {0}]
  %s3 = inlined_call_operand.hbm [shape: s8[2,1,64,128], index: 3, kind: output, shape index: {1}]
  %4 = xla_tuple %s2, %s3
  %s5 = sld [smem:[#allocation0]]
  $region57: #{_pointcloud_device.1} parent=0
    _
  %s7 = ssub.s32 1, %s5
  %s8 = scalar_select 0, %s7, %s5
  $region1: #{_pointcloud_device.1} parent=0
    #allocation2 [shape = 'u8[1024]{0}', space=smem, size = 0x400, scoped, tag = 'input window, operand 0, single buffered']
    #allocation3 [shape = 's32[2]{0}', space=sflag, size = 0x8, scoped, tag = 'scoped memory for _pointcloud_device.1']
    #allocation4 [shape = 's32[2]{0}', space=sflag, size = 0x8, scoped, tag = 'scoped memory for _pointcloud_device.1']
    #allocation5 [shape = 's32[2]{0}', space=sflag, size = 0x8, scoped, tag = 'scoped memory for _pointcloud_device.1']
    #allocation6 [shape = 'u8[65536]{0}', space=vmem, size = 0x10000, scoped, tag = 'input window, operand 1']
    #allocation7 [shape = 'u8[196608]{0}', space=vmem, size = 0x30000, scoped, tag = 'output window, operand 0']
    #allocation8 [shape = 'u8[16384]{0}', space=vmem, size = 0x4000, scoped, tag = 'output window, operand 1']
    #allocation9 [shape = 's32[2]{0}', space=sflag, size = 0x8, scoped, tag = 'scoped memory for _pointcloud_device.1']
    %9 = vsyncpa [#allocation5], 0
    %10 = vsyncpa [#allocation3], 0
    %s11 = scalar_lea.sflag [#allocation3], 1
    %12 = vsyncpa %s11, 0
    %13 = vsyncpa [#allocation4], 0
    %s14 = scalar_lea.sflag [#allocation4], 1
    %15 = vsyncpa %s14, 0
    %16 = vsyncpa [#allocation9], 0
    %s17 = scalar_lea.sflag [#allocation9], 1
    %18 = vsyncpa %s17, 0
    loop: start=0, step=1, limit=4
    $region2: #{_pointcloud_device.1} parent=1 // loop_pre_header
      _
    $region3: #{_pointcloud_device.1} parent=1 // loop_header
      %s20 = sphi 0, %s24
      %p21 = scmp.ge.s32.totalorder %s20, 4
      %s27 = sphi 0, %s39
      %s28 = sphi 0, %s35
      %s29 = sphi 0, %s27
      %s30 = sphi 0, %s28
      %s31 = sphi 0, %s29
      %s32 = sphi 0, %s30
      %s40 = sphi 0, %s40
      %s42 = sphi 0, %s40
      %s43 = sphi 0, %s42
      %s57 = sphi 0, %s43
      %s65 = sphi 0, %s67
      %s68 = sphi 0, %s65
      %s69 = sphi 0, %s68
      %s85 = sphi 0, %s69
      %s93 = sphi 0, %s95
      %s96 = sphi 0, %s93
      %s97 = sphi 0, %s96
      %s113 = sphi 0, %s97
      %s121 = sphi 0, %s123
      %s124 = sphi 0, %s121
      %s125 = sphi 0, %s124
      %s141 = sphi 0, %s125
    $region4: #{_pointcloud_device.1} parent=1 // loop_header_branch
      %23 = sbr.rel (%p21) target = $region8
    $region5: #{_pointcloud_device.1} parent=1 // loop_body
      %s25 = ssub.s32 %s20, 1
      %s26 = ssub.s32 %s20, 2
      %s33 = sadd.s32 1, %s28
      %p34 = scmp.ge.s32.totalorder %s33, 1
      %s35 = scalar_select %p34, 0, %s33
      %s36 = sadd.s32 1, %s27
      %s37 = scalar_select %p34, %s36, %s27
      %p38 = scmp.ge.s32.totalorder %s37, 2
      %s39 = scalar_select %p38, 0, %s37
      %s41 = sadd.s32 %s40, 1
      %p44 = scmp.eq.s32.totalorder %s20, 1
      %p45 = scmp.ne.s32.totalorder %s40, %s42
      %p46 = scmp.eq.s32.totalorder %s20, 0
      %p47 = por %p45, %p46
      %p48 = scmp.ne.s32.totalorder %s40, %s42
      %p49 = scmp.eq.s32.totalorder %s25, 1
      %p50 = por %p48, %p49
      %p51 = scmp.ne.s32.totalorder %s42, %s43
      %p52 = scmp.eq.s32.totalorder %s25, 0
      %p53 = por %p51, %p52
      %p54 = scmp.ne.s32.totalorder %s42, %s43
      %p55 = scmp.eq.s32.totalorder %s26, 1
      %p56 = por %p54, %p55
      %p58 = scmp.ne.s32.totalorder %s43, %s57
      %p59 = scmp.eq.s32.totalorder %s26, 0
      %p60 = por %p58, %p59
      %s61 = ssub.s32 %s27, %s39
      %s62 = ssub.s32 %s28, %s35
      %s63 = sor.u32 %s61, %s62
      %p64 = scmp.eq.s32.totalorder %s63, 0
      %s66 = sadd.s32 %s65, 1
      %s67 = scalar_select %p64, %s65, %s66
      %p70 = pneg %p64
      %p71 = scmp.eq.s32.totalorder %s20, 1
      %p72 = por %p70, %p71
      %p73 = scmp.ne.s32.totalorder %s65, %s68
      %p74 = scmp.eq.s32.totalorder %s20, 0
      %p75 = por %p73, %p74
      %p76 = scmp.ne.s32.totalorder %s65, %s68
      %p77 = scmp.eq.s32.totalorder %s25, 1
      %p78 = por %p76, %p77
      %p79 = scmp.ne.s32.totalorder %s68, %s69
      %p80 = scmp.eq.s32.totalorder %s25, 0
      %p81 = por %p79, %p80
      %p82 = scmp.ne.s32.totalorder %s68, %s69
      %p83 = scmp.eq.s32.totalorder %s26, 1
      %p84 = por %p82, %p83
      %p86 = scmp.ne.s32.totalorder %s69, %s85
      %p87 = scmp.eq.s32.totalorder %s26, 0
      %p88 = por %p86, %p87
      %s89 = ssub.s32 %s27, %s39
      %s90 = ssub.s32 %s28, %s35
      %s91 = sor.u32 %s89, %s90
      %p92 = scmp.eq.s32.totalorder %s91, 0
      %s94 = sadd.s32 %s93, 1
      %s95 = scalar_select %p92, %s93, %s94
      %p98 = pneg %p92
      %p99 = scmp.eq.s32.totalorder %s20, 1
      %p100 = por %p98, %p99
      %p101 = scmp.ne.s32.totalorder %s93, %s96
      %p102 = scmp.eq.s32.totalorder %s20, 0
      %p103 = por %p101, %p102
      %p104 = scmp.ne.s32.totalorder %s93, %s96
      %p105 = scmp.eq.s32.totalorder %s25, 1
      %p106 = por %p104, %p105
      %p107 = scmp.ne.s32.totalorder %s96, %s97
      %p108 = scmp.eq.s32.totalorder %s25, 0
      %p109 = por %p107, %p108
      %p110 = scmp.ne.s32.totalorder %s96, %s97
      %p111 = scmp.eq.s32.totalorder %s26, 1
      %p112 = por %p110, %p111
      %p114 = scmp.ne.s32.totalorder %s97, %s113
      %p115 = scmp.eq.s32.totalorder %s26, 0
      %p116 = por %p114, %p115
      %s117 = ssub.s32 %s27, %s39
      %s118 = ssub.s32 %s28, %s35
      %s119 = sor.u32 %s117, %s118
      %p120 = scmp.eq.s32.totalorder %s119, 0
      %s122 = sadd.s32 %s121, 1
      %s123 = scalar_select %p120, %s121, %s122
      %p126 = pneg %p120
      %p127 = scmp.eq.s32.totalorder %s20, 1
      %p128 = por %p126, %p127
      %p129 = scmp.ne.s32.totalorder %s121, %s124
      %p130 = scmp.eq.s32.totalorder %s20, 0
      %p131 = por %p129, %p130
      %p132 = scmp.ne.s32.totalorder %s121, %s124
      %p133 = scmp.eq.s32.totalorder %s25, 1
      %p134 = por %p132, %p133
      %p135 = scmp.ne.s32.totalorder %s124, %s125
      %p136 = scmp.eq.s32.totalorder %s25, 0
      %p137 = por %p135, %p136
      %p138 = scmp.ne.s32.totalorder %s124, %s125
      %p139 = scmp.eq.s32.totalorder %s26, 1
      %p140 = por %p138, %p139
      %p142 = scmp.ne.s32.totalorder %s125, %s141
      %p143 = scmp.eq.s32.totalorder %s26, 0
      %p144 = por %p142, %p143
      %p145 = scmp.le.s32.totalorder 1, %s20
      %p146 = scmp.lt.s32.totalorder %s20, 3
      %p147 = pnand %p145, %p146
      %p148 = pneg %p147
      // Predicated region
      $region9: #{_pointcloud_device.1} parent=5 // pred_check
        _
      $region10: #{_pointcloud_device.1} parent=5 // pred_check_branch
        %150 = sbr.rel (%p147) target = $region12
      $region11: #{_pointcloud_device.1} parent=5 // pred_region
        %s151 = ssub.s32 %s20, 1
        // Predicated region
        $region13: #{_pointcloud_device.1} parent=11 // pred_check
          %p152 = pneg %p53
        $region14: #{_pointcloud_device.1} parent=11 // pred_check_branch
          %154 = sbr.rel (%p152) target = $region16
        $region15: #{_pointcloud_device.1} parent=11 // pred_region
          %s156 = ssub.s32 32, 32
          %157 = vsyncadd [#allocation5], %s156
          %s159 = sshll.u32 %s0, 4
          %s160 = int_to_ptr.vmem [resolvable:$true] %s159
          %162 = dma.vmem_to_smem %s160, 32, [#allocation2], [#allocation5]
        $region16: #{_pointcloud_device.1} parent=11 // pred_fallthru
          _
      $region12: #{_pointcloud_device.1} parent=5 // pred_fallthru
        _
      %p163 = scmp.lt.s32.totalorder %s20, 2
      // Predicated region
      $region17: #{_pointcloud_device.1} parent=5 // pred_check
        %p164 = pneg %p163
      $region18: #{_pointcloud_device.1} parent=5 // pred_check_branch
        %166 = sbr.rel (%p164) target = $region20
      $region19: #{_pointcloud_device.1} parent=5 // pred_region
        // Predicated region
        $region21: #{_pointcloud_device.1} parent=19 // pred_check
          %p167 = pneg %p75
        $region22: #{_pointcloud_device.1} parent=19 // pred_check_branch
          %169 = sbr.rel (%p167) target = $region24
        $region23: #{_pointcloud_device.1} parent=19 // pred_region
          %s170 = sand.u32 %s65, 1
          %s171 = scalar_lea.sflag [#allocation3], %s170
          %s172 = sand.u32 %s65, 1
          %s173 = smul.addr %s172, 64
          %s174 = scalar_lea.vmem [#allocation6], %s173
          %s175 = smul.u32 8, %s28
          %s177 = ssub.s32 1024, 1024
          %178 = vsyncadd %s171, %s177
          %s179 = smul.addr %s27, 8
          %s180 = sadd.s32 %s175, %s179
          %s181 = smul.addr %s180, 128
          %s182 = scalar_lea.hbm %s1, %s181
          %s183 = sshll.u32 %s174, 4
          %s184 = int_to_ptr.vmem [resolvable:$true] %s183
          %189 = dma.hbm_to_vmem [thread:$0]  %s182, 1024, %s184, %s171, 128, 128, 8
        $region24: #{_pointcloud_device.1} parent=19 // pred_fallthru
          _
      $region20: #{_pointcloud_device.1} parent=5 // pred_fallthru
        _
      %p190 = scmp.le.s32.totalorder 1, %s20
      %p191 = scmp.lt.s32.totalorder %s20, 3
      %p192 = pnand %p190, %p191
      %p193 = pneg %p192
      // Predicated region
      $region25: #{_pointcloud_device.1} parent=5 // pred_check
        _
      $region26: #{_pointcloud_device.1} parent=5 // pred_check_branch
        %195 = sbr.rel (%p192) target = $region28
      $region27: #{_pointcloud_device.1} parent=5 // pred_region
        %s196 = ssub.s32 %s20, 1
        // Predicated region
        $region29: #{_pointcloud_device.1} parent=27 // pred_check
          %p197 = pneg %p53
        $region30: #{_pointcloud_device.1} parent=27 // pred_check_branch
          %199 = sbr.rel (%p197) target = $region32
        $region31: #{_pointcloud_device.1} parent=27 // pred_region
          %200 = dma.done [#allocation5], 32
        $region32: #{_pointcloud_device.1} parent=27 // pred_fallthru
          _
        %s201 = sand.u32 %s68, 1
        %s202 = scalar_lea.sflag [#allocation3], %s201
        %s203 = sand.u32 %s68, 1
        %s204 = smul.addr %s203, 64
        %s205 = scalar_lea.vmem [#allocation6], %s204
        // Predicated region
        $region33: #{_pointcloud_device.1} parent=27 // pred_check
          %p206 = pneg %p81
        $region34: #{_pointcloud_device.1} parent=27 // pred_check_branch
          %208 = sbr.rel (%p206) target = $region36
        $region35: #{_pointcloud_device.1} parent=27 // pred_region
          %209 = dma.done %s202, 1024
        $region36: #{_pointcloud_device.1} parent=27 // pred_fallthru
          _
        %210 = sfence
        %p211 = pneg %p53
        %p212 = pneg %p50
        %s213 = sand.u32 %s68, 1
        %s214 = scalar_lea.sflag [#allocation3], %s213
        %s215 = sand.u32 %s68, 1
        %s216 = smul.addr %s215, 64
        %s217 = scalar_lea.vmem [#allocation6], %s216
        %p218 = pneg %p81
        %p219 = pneg %p78
        %p220 = pneg %p109
        %p221 = pneg %p106
        %s222 = sand.u32 %s96, 1
        %s223 = scalar_lea.sflag [#allocation4], %s222
        %s224 = sand.u32 %s96, 1
        %s225 = smul.addr %s224, 192
        %s226 = scalar_lea.vmem [#allocation7], %s225
        %p227 = pneg %p137
        %p228 = pneg %p134
        %s229 = sand.u32 %s124, 1
        %s230 = scalar_lea.sflag [#allocation9], %s229
        %s231 = sand.u32 %s124, 1
        %s232 = smul.addr %s231, 16
        %s233 = scalar_lea.vmem [#allocation8], %s232
        %s234 = smul.u32 8, %s30
        %s235 = smul.u32 8, %s30
        %s236 = smul.u32 2, %s30
        %v239 = vld [vmem:[%s205] sm:$0xff]
        %v240 = vld [vmem:[%s205 + $0x8] sm:$0xff]
        %v241 = vld [vmem:[%s205 + $0x10] sm:$0xff]
        %v242 = vld [vmem:[%s205 + $0x18] sm:$0xff]
        %v243 = vld [vmem:[%s205 + $0x20] sm:$0xff]
        %v244 = vld [vmem:[%s205 + $0x28] sm:$0xff]
        %v245 = vld [vmem:[%s205 + $0x30] sm:$0xff]
        %v246 = vld [vmem:[%s205 + $0x38] sm:$0xff]
        %v247 = vmul.f32 %v239, 10.0
        %v248 = vmul.f32 %v240, 10.0
        %v249 = vmul.f32 %v241, 10.0
        %v250 = vmul.f32 %v242, 10.0
        %v251 = vmul.f32 %v243, 10.0
        %v252 = vmul.f32 %v244, 10.0
        %v253 = vmul.f32 %v245, 10.0
        %v254 = vmul.f32 %v246, 10.0
        %s255 = smul.u32 %s30, 64
        %s256 = scvt.s32.f32 %s255
        %v257 = vlaneseq
        %v258 = vand.u32 %v257, 127
        %v259 = vcvt.s32.f32 %v258
        %v260 = vlaneseq
        %v261 = vshrl.u32 %v260, 7
        %v262 = vadd.s32 %v261, 8
        %v263 = vadd.s32 %v261, 16
        %v264 = vadd.s32 %v261, 24
        %v265 = vadd.s32 %v261, 32
        %v266 = vadd.s32 %v261, 40
        %v267 = vadd.s32 %v261, 48
        %v268 = vadd.s32 %v261, 56
        %v269 = vcvt.s32.f32 %v261
        %v270 = vcvt.s32.f32 %v262
        %v271 = vcvt.s32.f32 %v263
        %v272 = vcvt.s32.f32 %v264
        %v273 = vcvt.s32.f32 %v265
        %v274 = vcvt.s32.f32 %v266
        %v275 = vcvt.s32.f32 %v267
        %v276 = vcvt.s32.f32 %v268
        %v277 = vadd.f32 %v259, -63.5
        %v278 = vmul.f32 %v277, 0.009021098
        %s279 = sadd.f32 %s256, 0.5
        %s280 = ssub.f32 %s279, 32.0
        %v281 = vstv %s280
        %v282 = vadd.f32 %v269, %v281
        %v283 = vadd.f32 %v270, %v281
        %v284 = vadd.f32 %v271, %v281
        %v285 = vadd.f32 %v272, %v281
        %v286 = vadd.f32 %v273, %v281
        %v287 = vadd.f32 %v274, %v281
        %v288 = vadd.f32 %v275, %v281
        %v289 = vadd.f32 %v276, %v281
        %v290 = vmul.f32 %v282, 0.018042196
        %v291 = vmul.f32 %v283, 0.018042196
        %v292 = vmul.f32 %v284, 0.018042196
        %v293 = vmul.f32 %v285, 0.018042196
        %v294 = vmul.f32 %v286, 0.018042196
        %v295 = vmul.f32 %v287, 0.018042196
        %v296 = vmul.f32 %v288, 0.018042196
        %v297 = vmul.f32 %v289, 0.018042196
        %s298 = smul.u32 %s29, 128
        %s299 = sld [smem:[#allocation2 + %s298]]
        %s300 = sadd.s32 %s298, 1
        %s301 = sld [smem:[#allocation2 + %s300]]
        %s302 = sadd.s32 %s298, 2
        %s303 = sld [smem:[#allocation2 + %s302]]
        %s304 = sadd.s32 %s298, 3
        %s305 = sld [smem:[#allocation2 + %s304]]
        %s306 = sadd.s32 %s298, 4
        %s307 = sld [smem:[#allocation2 + %s306]]
        %s308 = sadd.s32 %s298, 5
        %s309 = sld [smem:[#allocation2 + %s308]]
        %s310 = sadd.s32 %s298, 6
        %s311 = sld [smem:[#allocation2 + %s310]]
        %s312 = sadd.s32 %s298, 7
        %s313 = sld [smem:[#allocation2 + %s312]]
        %s314 = sadd.s32 %s298, 8
        %s315 = sld [smem:[#allocation2 + %s314]]
        %s316 = sadd.s32 %s298, 9
        %s317 = sld [smem:[#allocation2 + %s316]]
        %s318 = sadd.s32 %s298, 10
        %s319 = sld [smem:[#allocation2 + %s318]]
        %s320 = sadd.s32 %s298, 11
        %s321 = sld [smem:[#allocation2 + %s320]]
        %s322 = sadd.s32 %s298, 12
        %s323 = sld [smem:[#allocation2 + %s322]]
        %v324 = vstv %s299
        %v325 = vmul.f32 %v324, %v278
        %v326 = vstv %s303
        %v327 = vadd.f32 %v325, %v326
        %v328 = vstv %s301
        %v329 = vmul.f32 %v328, %v290
        %v330 = vmul.f32 %v328, %v291
        %v331 = vmul.f32 %v328, %v292
        %v332 = vmul.f32 %v328, %v293
        %v333 = vmul.f32 %v328, %v294
        %v334 = vmul.f32 %v328, %v295
        %v335 = vmul.f32 %v328, %v296
        %v336 = vmul.f32 %v328, %v297
        %v337 = vadd.f32 %v327, %v329
        %v338 = vadd.f32 %v327, %v330
        %v339 = vadd.f32 %v327, %v331
        %v340 = vadd.f32 %v327, %v332
        %v341 = vadd.f32 %v327, %v333
        %v342 = vadd.f32 %v327, %v334
        %v343 = vadd.f32 %v327, %v335
        %v344 = vadd.f32 %v327, %v336
        %v345 = vmul.f32 %v247, %v337
        %v346 = vmul.f32 %v248, %v338
        %v347 = vmul.f32 %v249, %v339
        %v348 = vmul.f32 %v250, %v340
        %v349 = vmul.f32 %v251, %v341
        %v350 = vmul.f32 %v252, %v342
        %v351 = vmul.f32 %v253, %v343
        %v352 = vmul.f32 %v254, %v344
        %v353 = vstv %s305
        %v354 = vadd.f32 %v345, %v353
        %v355 = vadd.f32 %v346, %v353
        %v356 = vadd.f32 %v347, %v353
        %v357 = vadd.f32 %v348, %v353
        %v358 = vadd.f32 %v349, %v353
        %v359 = vadd.f32 %v350, %v353
        %v360 = vadd.f32 %v351, %v353
        %v361 = vadd.f32 %v352, %v353
        %v362 = vstv %s307
        %v363 = vmul.f32 %v362, %v278
        %v364 = vstv %s311
        %v365 = vadd.f32 %v363, %v364
        %v366 = vstv %s309
        %v367 = vmul.f32 %v366, %v290
        %v368 = vmul.f32 %v366, %v291
        %v369 = vmul.f32 %v366, %v292
        %v370 = vmul.f32 %v366, %v293
        %v371 = vmul.f32 %v366, %v294
        %v372 = vmul.f32 %v366, %v295
        %v373 = vmul.f32 %v366, %v296
        %v374 = vmul.f32 %v366, %v297
        %v375 = vadd.f32 %v365, %v367
        %v376 = vadd.f32 %v365, %v368
        %v377 = vadd.f32 %v365, %v369
        %v378 = vadd.f32 %v365, %v370
        %v379 = vadd.f32 %v365, %v371
        %v380 = vadd.f32 %v365, %v372
        %v381 = vadd.f32 %v365, %v373
        %v382 = vadd.f32 %v365, %v374
        %v383 = vmul.f32 %v247, %v375
        %v384 = vmul.f32 %v248, %v376
        %v385 = vmul.f32 %v249, %v377
        %v386 = vmul.f32 %v250, %v378
        %v387 = vmul.f32 %v251, %v379
        %v388 = vmul.f32 %v252, %v380
        %v389 = vmul.f32 %v253, %v381
        %v390 = vmul.f32 %v254, %v382
        %v391 = vstv %s313
        %v392 = vadd.f32 %v383, %v391
        %v393 = vadd.f32 %v384, %v391
        %v394 = vadd.f32 %v385, %v391
        %v395 = vadd.f32 %v386, %v391
        %v396 = vadd.f32 %v387, %v391
        %v397 = vadd.f32 %v388, %v391
        %v398 = vadd.f32 %v389, %v391
        %v399 = vadd.f32 %v390, %v391
        %v400 = vstv %s315
        %v401 = vmul.f32 %v400, %v278
        %v402 = vstv %s319
        %v403 = vadd.f32 %v401, %v402
        %v404 = vstv %s317
        %v405 = vmul.f32 %v404, %v290
        %v406 = vmul.f32 %v404, %v291
        %v407 = vmul.f32 %v404, %v292
        %v408 = vmul.f32 %v404, %v293
        %v409 = vmul.f32 %v404, %v294
        %v410 = vmul.f32 %v404, %v295
        %v411 = vmul.f32 %v404, %v296
        %v412 = vmul.f32 %v404, %v297
        %v413 = vadd.f32 %v403, %v405
        %v414 = vadd.f32 %v403, %v406
        %v415 = vadd.f32 %v403, %v407
        %v416 = vadd.f32 %v403, %v408
        %v417 = vadd.f32 %v403, %v409
        %v418 = vadd.f32 %v403, %v410
        %v419 = vadd.f32 %v403, %v411
        %v420 = vadd.f32 %v403, %v412
        %v421 = vmul.f32 %v247, %v413
        %v422 = vmul.f32 %v248, %v414
        %v423 = vmul.f32 %v249, %v415
        %v424 = vmul.f32 %v250, %v416
        %v425 = vmul.f32 %v251, %v417
        %v426 = vmul.f32 %v252, %v418
        %v427 = vmul.f32 %v253, %v419
        %v428 = vmul.f32 %v254, %v420
        %v429 = vstv %s321
        %v430 = vadd.f32 %v421, %v429
        %v431 = vadd.f32 %v422, %v429
        %v432 = vadd.f32 %v423, %v429
        %v433 = vadd.f32 %v424, %v429
        %v434 = vadd.f32 %v425, %v429
        %v435 = vadd.f32 %v426, %v429
        %v436 = vadd.f32 %v427, %v429
        %v437 = vadd.f32 %v428, %v429
        %438 = vst [vmem:[%s226] sm:$0xff] %v354
        %439 = vst [vmem:[%s226 + $0x8] sm:$0xff] %v355
        %440 = vst [vmem:[%s226 + $0x10] sm:$0xff] %v356
        %441 = vst [vmem:[%s226 + $0x18] sm:$0xff] %v357
        %442 = vst [vmem:[%s226 + $0x20] sm:$0xff] %v358
        %443 = vst [vmem:[%s226 + $0x28] sm:$0xff] %v359
        %444 = vst [vmem:[%s226 + $0x30] sm:$0xff] %v360
        %445 = vst [vmem:[%s226 + $0x38] sm:$0xff] %v361
        %s446 = scalar_lea.vmem %s226, 64 [#allocation7]
        %447 = vst [vmem:[%s446] sm:$0xff] %v392
        %448 = vst [vmem:[%s446 + $0x8] sm:$0xff] %v393
        %449 = vst [vmem:[%s446 + $0x10] sm:$0xff] %v394
        %450 = vst [vmem:[%s446 + $0x18] sm:$0xff] %v395
        %451 = vst [vmem:[%s446 + $0x20] sm:$0xff] %v396
        %452 = vst [vmem:[%s446 + $0x28] sm:$0xff] %v397
        %453 = vst [vmem:[%s446 + $0x30] sm:$0xff] %v398
        %454 = vst [vmem:[%s446 + $0x38] sm:$0xff] %v399
        %s455 = scalar_lea.vmem %s226, 128 [#allocation7]
        %456 = vst [vmem:[%s455] sm:$0xff] %v430
        %457 = vst [vmem:[%s455 + $0x8] sm:$0xff] %v431
        %458 = vst [vmem:[%s455 + $0x10] sm:$0xff] %v432
        %459 = vst [vmem:[%s455 + $0x18] sm:$0xff] %v433
        %460 = vst [vmem:[%s455 + $0x20] sm:$0xff] %v434
        %461 = vst [vmem:[%s455 + $0x28] sm:$0xff] %v435
        %462 = vst [vmem:[%s455 + $0x30] sm:$0xff] %v436
        %463 = vst [vmem:[%s455 + $0x38] sm:$0xff] %v437
        %vm464 = vcmp.gt.f32.partialorder %v239, 0.01
        %vm465 = vcmp.gt.f32.partialorder %v240, 0.01
        %vm466 = vcmp.gt.f32.partialorder %v241, 0.01
        %vm467 = vcmp.gt.f32.partialorder %v242, 0.01
        %vm468 = vcmp.gt.f32.partialorder %v243, 0.01
        %vm469 = vcmp.gt.f32.partialorder %v244, 0.01
        %vm470 = vcmp.gt.f32.partialorder %v245, 0.01
        %vm471 = vcmp.gt.f32.partialorder %v246, 0.01
        %vm472 = vcmp.lt.f32.partialorder %v239, 0.99
        %vm473 = vcmp.lt.f32.partialorder %v240, 0.99
        %vm474 = vcmp.lt.f32.partialorder %v241, 0.99
        %vm475 = vcmp.lt.f32.partialorder %v242, 0.99
        %vm476 = vcmp.lt.f32.partialorder %v243, 0.99
        %vm477 = vcmp.lt.f32.partialorder %v244, 0.99
        %vm478 = vcmp.lt.f32.partialorder %v245, 0.99
        %vm479 = vcmp.lt.f32.partialorder %v246, 0.99
        %vm480 = vmand %vm464, %vm472
        %vm481 = vmand %vm465, %vm473
        %vm482 = vmand %vm466, %vm474
        %vm483 = vmand %vm467, %vm475
        %vm484 = vmand %vm468, %vm476
        %vm485 = vmand %vm469, %vm477
        %vm486 = vmand %vm470, %vm478
        %vm487 = vmand %vm471, %vm479
        %s488 = ssub.f32 %s323, 1.0
        %v489 = vstv %s488
        %vm490 = vcmp.gt.f32.partialorder %v392, %v489
        %vm491 = vcmp.gt.f32.partialorder %v393, %v489
        %vm492 = vcmp.gt.f32.partialorder %v394, %v489
        %vm493 = vcmp.gt.f32.partialorder %v395, %v489
        %vm494 = vcmp.gt.f32.partialorder %v396, %v489
        %vm495 = vcmp.gt.f32.partialorder %v397, %v489
        %vm496 = vcmp.gt.f32.partialorder %v398, %v489
        %vm497 = vcmp.gt.f32.partialorder %v399, %v489
        %s498 = sadd.f32 %s323, 0.5
        %v499 = vstv %s498
        %vm500 = vcmp.lt.f32.partialorder %v392, %v499
        %vm501 = vcmp.lt.f32.partialorder %v393, %v499
        %vm502 = vcmp.lt.f32.partialorder %v394, %v499
        %vm503 = vcmp.lt.f32.partialorder %v395, %v499
        %vm504 = vcmp.lt.f32.partialorder %v396, %v499
        %vm505 = vcmp.lt.f32.partialorder %v397, %v499
        %vm506 = vcmp.lt.f32.partialorder %v398, %v499
        %vm507 = vcmp.lt.f32.partialorder %v399, %v499
        %vm508 = vmand %vm490, %vm500
        %vm509 = vmand %vm491, %vm501
        %vm510 = vmand %vm492, %vm502
        %vm511 = vmand %vm493, %vm503
        %vm512 = vmand %vm494, %vm504
        %vm513 = vmand %vm495, %vm505
        %vm514 = vmand %vm496, %vm506
        %vm515 = vmand %vm497, %vm507
        %vm516 = vmand %vm480, %vm508
        %vm517 = vmand %vm481, %vm509
        %vm518 = vmand %vm482, %vm510
        %vm519 = vmand %vm483, %vm511
        %vm520 = vmand %vm484, %vm512
        %vm521 = vmand %vm485, %vm513
        %vm522 = vmand %vm486, %vm514
        %vm523 = vmand %vm487, %vm515
        %vm524 = vmpackc.low %vm517, %vm516
        %vm525 = vmpackc.low %vm519, %vm518
        %vm526 = vmpackc.even %vm525, %vm524
        %vm527 = vmpackc.low %vm521, %vm520
        %vm528 = vmpackc.low %vm523, %vm522
        %vm529 = vmpackc.even %vm528, %vm527
        %v530 = vsel %vm526, 16843009, 0
        %v531 = vsel %vm529, 16843009, 0
        %532 = vst [vmem:[%s233] sm:$0xff] %v530
        %533 = vst [vmem:[%s233 + $0x8] sm:$0xff] %v531
        %s534 = sand.u32 %s96, 1
        %s535 = scalar_lea.sflag [#allocation4], %s534
        %s536 = sand.u32 %s96, 1
        %s537 = smul.addr %s536, 192
        %s538 = scalar_lea.vmem [#allocation7], %s537
        %s539 = sand.u32 %s124, 1
        %s540 = scalar_lea.sflag [#allocation9], %s539
        %s541 = sand.u32 %s124, 1
        %s542 = smul.addr %s541, 16
        %s543 = scalar_lea.vmem [#allocation8], %s542
        // Predicated region
        $region37: #{_pointcloud_device.1} parent=27 // pred_check
          %p544 = pneg %p106
        $region38: #{_pointcloud_device.1} parent=27 // pred_check_branch
          %546 = sbr.rel (%p544) target = $region40
        $region39: #{_pointcloud_device.1} parent=27 // pred_region
          %s547 = smul.u32 8, %s30
          %s549 = ssub.s32 3072, 3072
          %550 = vsyncadd %s535, %s549
          %s551 = smul.addr %s29, 24
          %s552 = sadd.s32 %s547, %s551
          %s553 = smul.addr %s552, 128
          %s554 = scalar_lea.hbm %s2, %s553
          %s555 = sshll.u32 %s538, 4
          %s556 = int_to_ptr.vmem [resolvable:$true] %s555
          %561 = dma.vmem_to_hbm [thread:$0]  %s556, 3072, %s554, %s535, 128, 128, 8
        $region40: #{_pointcloud_device.1} parent=27 // pred_fallthru
          _
        // Predicated region
        $region41: #{_pointcloud_device.1} parent=27 // pred_check
          %p562 = pneg %p134
        $region42: #{_pointcloud_device.1} parent=27 // pred_check_branch
          %564 = sbr.rel (%p562) target = $region44
        $region43: #{_pointcloud_device.1} parent=27 // pred_region
          %s565 = smul.u32 2, %s30
          %s567 = ssub.s32 256, 256
          %568 = vsyncadd %s540, %s567
          %s569 = smul.addr %s29, 2
          %s570 = sadd.s32 %s565, %s569
          %s571 = smul.addr %s570, 128
          %s572 = scalar_lea.hbm %s3, %s571
          %s573 = sshll.u32 %s543, 4
          %s574 = int_to_ptr.vmem [resolvable:$true] %s573
          %579 = dma.vmem_to_hbm [thread:$0]  %s574, 256, %s572, %s540, 128, 128, 8
        $region44: #{_pointcloud_device.1} parent=27 // pred_fallthru
          _
      $region28: #{_pointcloud_device.1} parent=5 // pred_fallthru
        _
      %p580 = scmp.le.s32.totalorder 2, %s20
      // Predicated region
      $region45: #{_pointcloud_device.1} parent=5 // pred_check
        %p581 = pneg %p580
      $region46: #{_pointcloud_device.1} parent=5 // pred_check_branch
        %583 = sbr.rel (%p581) target = $region48
      $region47: #{_pointcloud_device.1} parent=5 // pred_region
        %s584 = ssub.s32 %s20, 2
        // Predicated region
        $region49: #{_pointcloud_device.1} parent=47 // pred_check
          %p585 = pneg %p112
        $region50: #{_pointcloud_device.1} parent=47 // pred_check_branch
          %587 = sbr.rel (%p585) target = $region52
        $region51: #{_pointcloud_device.1} parent=47 // pred_region
          %s588 = sand.u32 %s97, 1
          %s589 = scalar_lea.sflag [#allocation4], %s588
          %s590 = sand.u32 %s97, 1
          %s591 = smul.addr %s590, 192
          %s592 = scalar_lea.vmem [#allocation7], %s591
          %593 = dma.done %s589, 3072
        $region52: #{_pointcloud_device.1} parent=47 // pred_fallthru
          _
        // Predicated region
        $region53: #{_pointcloud_device.1} parent=47 // pred_check
          %p594 = pneg %p140
        $region54: #{_pointcloud_device.1} parent=47 // pred_check_branch
          %596 = sbr.rel (%p594) target = $region56
        $region55: #{_pointcloud_device.1} parent=47 // pred_region
          %s597 = sand.u32 %s125, 1
          %s598 = scalar_lea.sflag [#allocation9], %s597
          %s599 = sand.u32 %s125, 1
          %s600 = smul.addr %s599, 16
          %s601 = scalar_lea.vmem [#allocation8], %s600
          %602 = dma.done %s598, 256
        $region56: #{_pointcloud_device.1} parent=47 // pred_fallthru
          _
      $region48: #{_pointcloud_device.1} parent=5 // pred_fallthru
        _
    $region6: #{_pointcloud_device.1} parent=1 // loop_footer
      %s24 = sadd.s32 1, %s20
    $region7: #{_pointcloud_device.1} parent=1 // loop_footer_branch
      %19 = sbr.rel target = $region3
    $region8: #{_pointcloud_device.1} parent=1 // loop_exit
      _
    %603 = vsyncpa [#allocation3], 1
    %s604 = scalar_lea.sflag [#allocation3], 1
    %605 = vsyncpa %s604, 1
    %606 = vsyncpa [#allocation4], 1
    %s607 = scalar_lea.sflag [#allocation4], 1
    %608 = vsyncpa %s607, 1
    %609 = vsyncpa [#allocation9], 1
    %s610 = scalar_lea.sflag [#allocation9], 1
    %611 = vsyncpa %s610, 1
    %612 = vsyncpa [#allocation5], 1
    %s613 = scalar_lea.sflag [#allocation5], 1
    %614 = vsyncpa %s613, 1

</llo_original>
